<compile_context>
chip_gen: v6e
topology: v6e:2x2x1
jax: 0.10.0
libtpu: 0.0.40
codegen_flags: <defaults>
</compile_context>

<pallas_src>
import numpy as np
import jax
import jax.numpy as jnp
from jax.experimental import pallas as pl
from jax.experimental.pallas import tpu as pltpu


def _round_up(x: int, m: int) -> int:
    return ((x + m - 1) // m) * m


def _softplus_inverse(x: float) -> float:
    # inverse of softplus: log(exp(x) - 1)
    return float(np.log(np.expm1(x)))


def _ebp_kernel(inp_ref, wx_ref, wc_ref, logc_ref, out_ref):
    """One (TR, LANE) lane-dense output block.

    inp_ref : (TR, Cd)   bf16  [a0|a1|a2 | l0|l1|l2 | c0|c1|c2 | zero-pad] x G cols
    wx_ref  : (Cd, LANE) bf16  block-diag n_eff / v coefficients (exponent dot)
    wc_ref  : (Cd, LANE) bf16  block-diag 0/1 cutoff expander
    logc_ref: (1, LANE)  f32   log-binomial constants
    """
    m = inp_ref[...]
    # Affine exponent (minus logc) on the MXU; f32 accumulation.
    x_lin = jnp.dot(m, wx_ref[...], preferred_element_type=jnp.float32)
    # Cutoff values expanded to the grouped lane layout, also on the MXU.
    c_e = jnp.dot(m, wc_ref[...], preferred_element_type=jnp.float32)
    x = x_lin + logc_ref[...]                       # (TR, LANE) f32
    out_ref[...] = (c_e * jnp.exp(x)).astype(out_ref.dtype)


class ExponentialBernsteinPolynomialsPallas:
    def __init__(
        self,
        num_basis_functions: int,
        no_basis_function_at_infinity: bool = False,
        ini_alpha: float = 0.944863062918464,
        exp_weighting: bool = False,
        out_dtype=jnp.float32,      # bf16 halves HBM writeback if downstream tolerates it
    ):
        self.exp_weighting = exp_weighting
        self.out_dtype = out_dtype

        nb = num_basis_functions
        if no_basis_function_at_infinity:
            nb += 1
        logfactorial = np.zeros(nb)
        for i in range(2, nb):
            logfactorial[i] = logfactorial[i - 1] + np.log(i)
        v = np.arange(0, nb)
        n = nb - 1 - v
        logbinomial = logfactorial[-1] - logfactorial[v] - logfactorial[n]
        if no_basis_function_at_infinity:
            v = v[:-1]
            n = n[:-1]
            logbinomial = logbinomial[:-1]

        K = len(v)
        self.num_basis_functions = K

        # float32 buffers kept for the pure-JAX reference / inspection.
        self.logc = jnp.asarray(logbinomial, dtype=jnp.float32).reshape(1, -1)
        self.n = jnp.asarray(n, dtype=jnp.float32).reshape(1, -1)
        self.v = jnp.asarray(v, dtype=jnp.float32).reshape(1, -1)

        # Lane-dense layout: pad K up to Kp (a divisor of 128, or a multiple of
        # 128 when K > 128) so the grouped output last dim is a multiple of 128.
        if K <= 128:
            Kp = 1
            while Kp < K:
                Kp *= 2
            G = 128 // Kp
        else:
            Kp = _round_up(K, 128)
            G = 1
        self._Kp = Kp
        self._G = G
        LANE = G * Kp
        self._LANE = LANE

        # Per-lane coefficients (padded basis lanes get harmless zeros -> finite
        # x = 0, and a zero cutoff expander -> output 0, sliced off afterwards).
        n_eff = np.zeros(Kp)
        n_eff[:K] = n + (1.0 if exp_weighting else 0.0)   # exp_weighting folded in
        v_pad = np.zeros(Kp)
        v_pad[:K] = v
        logc_pad = np.zeros(Kp)
        logc_pad[:K] = logbinomial
        valid = np.zeros(Kp)
        valid[:K] = 1.0

        # Contraction dim: 3 quantities x 3 exact bf16 parts x G group columns,
        # rounded up to a multiple of 16 (bf16 sublane tile) with zero rows.
        Cd = _round_up(9 * G, 16)
        self._Cd = Cd

        Wx = np.zeros((Cd, LANE), np.float32)
        Wc = np.zeros((Cd, LANE), np.float32)
        for g in range(G):
            cols = slice(g * Kp, (g + 1) * Kp)
            for p in range(3):                       # the 3 exact bf16 parts
                Wx[(0 + p) * G + g, cols] = n_eff    # alphar parts -> n_eff
                Wx[(3 + p) * G + g, cols] = v_pad    # log1m parts -> v
                Wc[(6 + p) * G + g, cols] = valid    # cutoff parts -> 0/1 expander
        # n_eff / v / 0-1 entries are small integers -> exactly representable in bf16.
        self._wx = jnp.asarray(Wx, dtype=jnp.bfloat16)
        self._wc = jnp.asarray(Wc, dtype=jnp.bfloat16)
        self._logc_lane = jnp.asarray(np.tile(logc_pad, G).reshape(1, LANE),
                                      dtype=jnp.float32)

        # Deterministic parameter init, matching reset_parameters().
        self._alpha = jnp.asarray(_softplus_inverse(ini_alpha), dtype=jnp.float32)

    @staticmethod
    def _split3_bf16(q):
        """Exact 3-way bf16 split of a float32 array: q0 + q1 + q2 == q."""
        q0 = q.astype(jnp.bfloat16)
        r1 = q - q0.astype(jnp.float32)
        q1 = r1.astype(jnp.bfloat16)
        q2 = (r1 - q1.astype(jnp.float32)).astype(jnp.bfloat16)
        return q0, q1, q2

    def __call__(self, r: jnp.ndarray, cutoff_values: jnp.ndarray) -> jnp.ndarray:
        N = int(r.shape[0])
        K = self.num_basis_functions
        Kp, G, LANE, Cd = self._Kp, self._G, self._LANE, self._Cd

        # Grouped rows (G distances per 128-lane output row).
        R = -(-N // G)

        # Row tile: big enough to amortize per-step overhead, capped at 2048
        # (v7x VMEM-safe), and chosen so the grid has >= 2 steps when possible
        # so both v7x TensorCores get work under dimension_semantics=parallel.
        TR_CAP = 2048
        if R <= 16:
            TR = 16
        else:
            steps = max(2, -(-R // TR_CAP))
            TR = min(TR_CAP, _round_up(-(-R // steps), 16))
        R_pad = _round_up(R, TR)
        N_pad = R_pad * G
        grid = R_pad // TR

        # Stable softplus, once, in the wrapper.
        alpha = jax.nn.softplus(self._alpha)

        r_flat = r.reshape(-1).astype(jnp.float32)
        c_flat = cutoff_values.reshape(-1).astype(jnp.float32)
        pad = N_pad - N
        if pad:
            # padded distances use r=1 (finite log1m) and cutoff=0; sliced off below.
            r_flat = jnp.concatenate([r_flat, jnp.ones((pad,), jnp.float32)])
            c_flat = jnp.concatenate([c_flat, jnp.zeros((pad,), jnp.float32)])

        # Per-distance transcendentals ONCE on the dense flat array (K x fewer
        # elements than the output) -> only exp() remains in the hot path.
        alphar = -alpha * r_flat
        log1m = jnp.log(-jnp.expm1(alphar))

        # Build the (R_pad, Cd) bf16 MXU input: exact 3-way bf16 split of
        # [alphar | log1m | cutoff], grouped G distances per row.
        cols = []
        for q in (alphar, log1m, c_flat):
            for part in self._split3_bf16(q):
                cols.append(part.reshape(R_pad, G))
        if Cd > 9 * G:
            cols.append(jnp.zeros((R_pad, Cd - 9 * G), jnp.bfloat16))
        m = jnp.concatenate(cols, axis=1)            # (R_pad, Cd) bf16

        out = pl.pallas_call(
            _ebp_kernel,
            out_shape=jax.ShapeDtypeStruct((R_pad, LANE), self.out_dtype),
            grid_spec=pltpu.PrefetchScalarGridSpec(
                num_scalar_prefetch=0,
                grid=(grid,),
                in_specs=[
                    pl.BlockSpec((TR, Cd), lambda i: (i, 0)),       # split inputs
                    pl.BlockSpec((Cd, LANE), lambda i: (0, 0)),     # Wx (constant)
                    pl.BlockSpec((Cd, LANE), lambda i: (0, 0)),     # Wc (constant)
                    pl.BlockSpec((1, LANE), lambda i: (0, 0)),      # logc (constant)
                ],
                out_specs=pl.BlockSpec((TR, LANE), lambda i: (i, 0)),
            ),
            compiler_params=pltpu.CompilerParams(
                dimension_semantics=("parallel",),
                vmem_limit_bytes=40 * 1024 * 1024,
            ),
        )(m, self._wx, self._wc, self._logc_lane)

        # Row-major (R_pad, G*Kp) has identical bytes to (N_pad, Kp).
        out2 = out.reshape(N_pad, Kp)
        if Kp == K and pad == 0:
            return out2                                # no un-padding copy needed
        if Kp == K:
            return out2[:N]
        # TODO(synk): when Kp != K the [:N, :K] slice materializes a copy; consumers
        # that accept the padded layout can take `out2` directly.
        return out2[:N, :K]


def _reference_jax(mod: ExponentialBernsteinPolynomialsPallas, r, cutoff_values):
    # Mirrors the PyTorch forward (no exponent folding) in float32.
    alpha = jax.nn.softplus(mod._alpha)
    alphar = -alpha * r.reshape(-1, 1).astype(jnp.float32)
    x = mod.logc + mod.n * alphar + mod.v * jnp.log(-jnp.expm1(alphar))
    rbf = cutoff_values.reshape(-1, 1).astype(jnp.float32) * jnp.exp(x)
    if mod.exp_weighting:
        rbf = rbf * jnp.exp(alphar)
    return rbf


if __name__ == "__main__":
    key = jax.random.PRNGKey(0)
    k1, k2, k3, k4 = jax.random.split(key, 4)

    # Case 1: K divides 128 (Kp == K), exp_weighting on.
    N1, K1 = 16, 32
    r1 = jax.random.uniform(k1, (N1,), minval=0.5, maxval=5.0, dtype=jnp.float32)
    c1 = jax.random.uniform(k2, (N1,), minval=0.0, maxval=1.0, dtype=jnp.float32)
    mod1 = ExponentialBernsteinPolynomialsPallas(
        num_basis_functions=K1, no_basis_function_at_infinity=False, exp_weighting=True)
    out1 = jax.block_until_ready(mod1(r1, c1))
    ref1 = _reference_jax(mod1, r1, c1)
    np.testing.assert_allclose(np.asarray(out1), np.asarray(ref1), rtol=1e-4, atol=1e-6)

    # Case 2: K=20 (lane-padded to Kp=32), multi-step grid, basis trimming at infinity.
    N2, K2 = 200, 20
    r2 = jax.random.uniform(k3, (N2,), minval=0.5, maxval=5.0, dtype=jnp.float32)
    c2 = jax.random.uniform(k4, (N2,), minval=0.0, maxval=1.0, dtype=jnp.float32)
    mod2 = ExponentialBernsteinPolynomialsPallas(
        num_basis_functions=K2, no_basis_function_at_infinity=True, exp_weighting=False)
    out2 = jax.block_until_ready(mod2(r2, c2))
    ref2 = _reference_jax(mod2, r2, c2)
    assert out2.shape == (N2, K2)
    np.testing.assert_allclose(np.asarray(out2), np.asarray(ref2), rtol=1e-4, atol=1e-6)

    print("KERNEL_OK")
</pallas_src>

<mosaic_0001>
module attributes {stable_mosaic.version = 11 : i64} {
  func.func @_ebp_kernel(%arg0: i32, %arg1: memref<16x48xbf16, #tpu.memory_space<vmem>>, %arg2: memref<48x128xbf16, #tpu.memory_space<vmem>>, %arg3: memref<48x128xbf16, #tpu.memory_space<vmem>>, %arg4: memref<1x128xf32, #tpu.memory_space<vmem>>, %arg5: memref<16x128xf32, #tpu.memory_space<vmem>>) attributes {dimension_semantics = [#tpu.dimension_semantics<parallel>], iteration_bounds = array<i64: 1>, scalar_prefetch = 0 : i64, scratch_operands = 0 : i64, tpu.core_type = #tpu.core_type<tc>, window_params = [{transform_indices = @transform_0, window_bounds = array<i64: 16, 48>}, {pipeline_mode = #tpu.pipeline_mode<synchronous>, transform_indices = @transform_1, window_bounds = array<i64: 48, 128>}, {pipeline_mode = #tpu.pipeline_mode<synchronous>, transform_indices = @transform_2, window_bounds = array<i64: 48, 128>}, {pipeline_mode = #tpu.pipeline_mode<synchronous>, transform_indices = @transform_3, window_bounds = array<i64: 1, 128>}, {transform_indices = @transform_4, window_bounds = array<i64: 16, 128>}]} {
    %c0 = arith.constant 0 : index
    %c0_0 = arith.constant 0 : index
    %0 = vector.load %arg1[%c0, %c0_0] : memref<16x48xbf16, #tpu.memory_space<vmem>>, vector<16x48xbf16>
    %c0_1 = arith.constant 0 : index
    %c0_2 = arith.constant 0 : index
    %1 = vector.load %arg2[%c0_1, %c0_2] : memref<48x128xbf16, #tpu.memory_space<vmem>>, vector<48x128xbf16>
    %cst = arith.constant dense<0.000000e+00> : vector<16x128xf32>
    %2 = tpu.matmul %0, %1, %cst {dimension_numbers = #tpu.dot_dimension_numbers<[1], [0], [0], [1], [0, 0, 1, 1], [], []>} : vector<16x48xbf16>, vector<48x128xbf16>, vector<16x128xf32> -> vector<16x128xf32>
    %c0_3 = arith.constant 0 : index
    %c0_4 = arith.constant 0 : index
    %3 = vector.load %arg3[%c0_3, %c0_4] : memref<48x128xbf16, #tpu.memory_space<vmem>>, vector<48x128xbf16>
    %cst_5 = arith.constant dense<0.000000e+00> : vector<16x128xf32>
    %4 = tpu.matmul %0, %3, %cst_5 {dimension_numbers = #tpu.dot_dimension_numbers<[1], [0], [0], [1], [0, 0, 1, 1], [], []>} : vector<16x48xbf16>, vector<48x128xbf16>, vector<16x128xf32> -> vector<16x128xf32>
    %c0_6 = arith.constant 0 : index
    %c0_7 = arith.constant 0 : index
    %5 = vector.load %arg4[%c0_6, %c0_7] : memref<1x128xf32, #tpu.memory_space<vmem>>, vector<1x128xf32>
    %6 = vector.broadcast %5 : vector<1x128xf32> to vector<16x128xf32>
    %7 = arith.addf %2, %6 : vector<16x128xf32>
    %8 = math.exp %7 : vector<16x128xf32>
    %9 = arith.mulf %4, %8 : vector<16x128xf32>
    %c0_8 = arith.constant 0 : index
    %c0_9 = arith.constant 0 : index
    %10 = vector.load %arg5[%c0_8, %c0_9] : memref<16x128xf32, #tpu.memory_space<vmem>>, vector<16x128xf32>
    tpu.vector_store %arg5[%c0_8, %c0_9], %9 {strides = array<i32>} : memref<16x128xf32, #tpu.memory_space<vmem>>, vector<16x128xf32>,
    return
  }
  func.func @transform_0(%arg0: i32) -> (i32, i32) {
    %c0_i32 = arith.constant 0 : i32
    %c0_i32_0 = arith.constant 0 : i32
    return %arg0, %c0_i32 : i32, i32
  }
  func.func @transform_1(%arg0: i32) -> (i32, i32) {
    %c0_i32 = arith.constant 0 : i32
    %c0_i32_0 = arith.constant 0 : i32
    %c0_i32_1 = arith.constant 0 : i32
    return %c0_i32, %c0_i32_0 : i32, i32
  }
  func.func @transform_2(%arg0: i32) -> (i32, i32) {
    %c0_i32 = arith.constant 0 : i32
    %c0_i32_0 = arith.constant 0 : i32
    %c0_i32_1 = arith.constant 0 : i32
    return %c0_i32, %c0_i32_0 : i32, i32
  }
  func.func @transform_3(%arg0: i32) -> (i32, i32) {
    %c0_i32 = arith.constant 0 : i32
    %c0_i32_0 = arith.constant 0 : i32
    %c0_i32_1 = arith.constant 0 : i32
    return %c0_i32, %c0_i32_0 : i32, i32
  }
  func.func @transform_4(%arg0: i32) -> (i32, i32) {
    %c0_i32 = arith.constant 0 : i32
    %c0_i32_0 = arith.constant 0 : i32
    return %arg0, %c0_i32 : i32, i32
  }
}

</mosaic_0001>

<llo_original>
// kernel: tpu_custom_call.1
$region0: #{tpu_custom_call.1}
  #allocation0 [shape = 'u32[]', space=smem, size = 0x4, offset = 0x4, fixed_abs, tag = 'smem constant byte address 0x4 - core index']
  #allocation1 [shape = 'u32[144,128]{1,0:T(1,128)}', space=vmem, size = 0x12000, scoped, tag = 'internal scratch']
  %s0 = inlined_call_operand.hbm [shape: bf16[16,48], index: 0, kind: input, shape index: {}]
  %s1 = inlined_call_operand.hbm [shape: bf16[48,128], index: 1, kind: input, shape index: {}]
  %s2 = inlined_call_operand.hbm [shape: bf16[48,128], index: 2, kind: input, shape index: {}]
  %s3 = inlined_call_operand.vmem [shape: f32[1,128], index: 3, kind: input, shape index: {}]
  %s4 = inlined_call_operand.hbm [shape: f32[16,128], index: 4, kind: output, shape index: {}]
  %s5 = sld [smem:[#allocation0]]
  $region38: #{tpu_custom_call.1} parent=0
    _
  %s7 = ssub.s32 1, %s5
  %s8 = scalar_select 0, %s7, %s5
  $region1: #{tpu_custom_call.1} parent=0
    #allocation2 [shape = 'u8[4096]{0}', space=vmem, size = 0x1000, scoped, tag = 'input window, operand 0, single buffered']
    #allocation3 [shape = 's32[1]{0}', space=sflag, size = 0x4, scoped, tag = 'scoped memory for tpu_custom_call.1']
    #allocation4 [shape = 's32[1]{0}', space=sflag, size = 0x4, scoped, tag = 'scoped memory for tpu_custom_call.1']
    #allocation5 [shape = 'u8[12288]{0}', space=vmem, size = 0x3000, scoped, tag = 'input window, operand 1, single buffered']
    #allocation6 [shape = 's32[1]{0}', space=sflag, size = 0x4, scoped, tag = 'scoped memory for tpu_custom_call.1']
    #allocation7 [shape = 'u8[12288]{0}', space=vmem, size = 0x3000, scoped, tag = 'input window, operand 2, single buffered']
    #allocation8 [shape = 'u8[8192]{0}', space=vmem, size = 0x2000, scoped, tag = 'output window, operand 0, single buffered']
    %9 = vsyncpa [#allocation3], 0
    %10 = vsyncpa [#allocation6], 0
    %11 = vsyncpa [#allocation4], 0
    // Predicated region
    $region2: #{tpu_custom_call.1} parent=1 // pred_check
      _
    $region3: #{tpu_custom_call.1} parent=1 // pred_check_branch
      %13 = sbr.rel (0) target = $region5
    $region4: #{tpu_custom_call.1} parent=1 // pred_region
      %s15 = ssub.s32 128, 128
      %16 = vsyncadd [#allocation3], %s15
      %s17 = sshll.u32 [#allocation2], 4
      %s18 = int_to_ptr.vmem [resolvable:$true] %s17
      %23 = dma.hbm_to_vmem [thread:$0]  %s0, 128, %s18, [#allocation3], 64, 64, 4
    $region5: #{tpu_custom_call.1} parent=1 // pred_fallthru
      _
    // Predicated region
    $region6: #{tpu_custom_call.1} parent=1 // pred_check
      _
    $region7: #{tpu_custom_call.1} parent=1 // pred_check_branch
      %25 = sbr.rel (0) target = $region9
    $region8: #{tpu_custom_call.1} parent=1 // pred_region
      %s27 = ssub.s32 384, 384
      %28 = vsyncadd [#allocation6], %s27
      %s29 = sshll.u32 [#allocation5], 4
      %s30 = int_to_ptr.vmem [resolvable:$true] %s29
      %35 = dma.hbm_to_vmem [thread:$0]  %s1, 384, %s30, [#allocation6], 64, 64, 4
    $region9: #{tpu_custom_call.1} parent=1 // pred_fallthru
      _
    // Predicated region
    $region10: #{tpu_custom_call.1} parent=1 // pred_check
      _
    $region11: #{tpu_custom_call.1} parent=1 // pred_check_branch
      %37 = sbr.rel (0) target = $region13
    $region12: #{tpu_custom_call.1} parent=1 // pred_region
      %s39 = ssub.s32 384, 384
      %40 = vsyncadd [#allocation6], %s39
      %s41 = sshll.u32 [#allocation7], 4
      %s42 = int_to_ptr.vmem [resolvable:$true] %s41
      %47 = dma.hbm_to_vmem [thread:$0]  %s2, 384, %s42, [#allocation6], 64, 64, 4
    $region13: #{tpu_custom_call.1} parent=1 // pred_fallthru
      _
    // Predicated region
    $region14: #{tpu_custom_call.1} parent=1 // pred_check
      _
    $region15: #{tpu_custom_call.1} parent=1 // pred_check_branch
      %49 = sbr.rel (0) target = $region17
    $region16: #{tpu_custom_call.1} parent=1 // pred_region
      _
    $region17: #{tpu_custom_call.1} parent=1 // pred_fallthru
      _
    // Predicated region
    $region18: #{tpu_custom_call.1} parent=1 // pred_check
      _
    $region19: #{tpu_custom_call.1} parent=1 // pred_check_branch
      %51 = sbr.rel (0) target = $region21
    $region20: #{tpu_custom_call.1} parent=1 // pred_region
      %52 = dma.done [#allocation3], 128
    $region21: #{tpu_custom_call.1} parent=1 // pred_fallthru
      _
    // Predicated region
    $region22: #{tpu_custom_call.1} parent=1 // pred_check
      _
    $region23: #{tpu_custom_call.1} parent=1 // pred_check_branch
      %54 = sbr.rel (0) target = $region25
    $region24: #{tpu_custom_call.1} parent=1 // pred_region
      %55 = dma.done [#allocation6], 384
    $region25: #{tpu_custom_call.1} parent=1 // pred_fallthru
      _
    // Predicated region
    $region26: #{tpu_custom_call.1} parent=1 // pred_check
      _
    $region27: #{tpu_custom_call.1} parent=1 // pred_check_branch
      %57 = sbr.rel (0) target = $region29
    $region28: #{tpu_custom_call.1} parent=1 // pred_region
      %58 = dma.done [#allocation6], 384
    $region29: #{tpu_custom_call.1} parent=1 // pred_fallthru
      _
    %v60 = vld [vmem:[#allocation2] sm:$0xf]
    %v61 = vld [vmem:[#allocation2 + $0x4] sm:$0xf]
    %v62 = vld [vmem:[#allocation5] sm:$0xf]
    %v63 = vld [vmem:[#allocation5 + $0x4] sm:$0xf]
    %v64 = vld [vmem:[#allocation5 + $0x8] sm:$0xf]
    %v65 = vld [vmem:[#allocation5 + $0xc] sm:$0xf]
    %v66 = vld [vmem:[#allocation5 + $0x10] sm:$0xf]
    %v67 = vld [vmem:[#allocation5 + $0x14] sm:$0xf]
    %v68 = vld [vmem:[#allocation7] sm:$0xf]
    %v69 = vld [vmem:[#allocation7 + $0x4] sm:$0xf]
    %v70 = vld [vmem:[#allocation7 + $0x8] sm:$0xf]
    %v71 = vld [vmem:[#allocation7 + $0xc] sm:$0xf]
    %v72 = vld [vmem:[#allocation7 + $0x10] sm:$0xf]
    %v73 = vld [vmem:[#allocation7 + $0x14] sm:$0xf]
    %v76 = vunpack.c.l.b16 %v60
    %v77 = vunpack.c.l.b16 %v61
    %v78 = vpack.c.b16 %v77, %v76
    %v85 = vunpack.c.l.b16 %v68
    %v86 = vunpack.c.l.b16 %v69
    %v87 = vunpack.c.l.b16 %v70
    %v88 = vunpack.c.l.b16 %v71
    %v89 = vunpack.c.l.b16 %v72
    %v90 = vunpack.c.l.b16 %v73
    %v91 = vpack.c.b16 %v86, %v85
    %v92 = vpack.c.b16 %v88, %v87
    %v93 = vpack.c.b16 %v90, %v89
    %vm97 = vcmask 392192
    %v99 = vsel %vm97, %v78, 0
    %101 = vmatprep.subr.bf16.mxu0 0
    %102 = vmatpush1.bf16.msra.mxu0 0
    %103 = vmatprep.subr.bf16.mxu0 0
    %104 = vmatpush1.bf16.msra.mxu0 0
    %105 = vmatprep.subr.bf16.mxu0 0
    %106 = vmatpush1.bf16.msra.mxu0 0
    %107 = vmatprep.subr.bf16.mxu0 0
    %108 = vmatpush1.bf16.msra.mxu0 0
    %109 = vmatprep.subr.bf16.mxu0 0
    %110 = vmatpush1.bf16.msra.mxu0 0
    %111 = vmatprep.subr.bf16.mxu0 0
    %112 = vmatpush1.bf16.msra.mxu0 %v93
    %113 = vmatprep.subr.bf16.mxu0 0
    %114 = vmatpush1.bf16.msra.mxu0 %v92
    %115 = vmatprep.subr.bf16.mxu0 0
    %116 = vmatpush1.bf16.msra.mxu0 %v91
    %117 = vmatprep.subr.bf16.mxu0 0
    %118 = vmatpush2.bf16.msra.mxu0 0
    %119 = vmatprep.subr.bf16.mxu0 0
    %120 = vmatpush2.bf16.msra.mxu0 0
    %121 = vmatprep.subr.bf16.mxu0 0
    %122 = vmatpush2.bf16.msra.mxu0 0
    %123 = vmatprep.subr.bf16.mxu0 0
    %124 = vmatpush2.bf16.msra.mxu0 0
    %125 = vmatprep.subr.bf16.mxu0 0
    %126 = vmatpush2.bf16.msra.mxu0 0
    %127 = vmatprep.subr.bf16.mxu0 0
    %128 = vmatpush2.bf16.msra.mxu0 0
    %129 = vmatprep.subr.bf16.mxu0 0
    %130 = vmatpush2.bf16.msra.mxu0 0
    %131 = vmatprep.subr.bf16.mxu0 0
    %132 = vmatpush2.bf16.msra.mxu0 0
    %133 = vmatprep.mubr.bf16.mxu0 0
    %134 = vmatmul.mubr.bf16.gmra.mxu0 %v99
    %v135 = vpop.f32.mrf.mxu0
    %v136 = vadd.f32 0.0, %v135
    %v137 = vpop.f32.mrf.mxu0
    %v138 = vpop.f32.mrf.mxu0
    %v139 = vadd.f32 0.0, %v138
    %v140 = vpop.f32.mrf.mxu0
    %141 = vdwg.mxu0
    %v142 = vld [vmem:[%s3] sm:$0x1]
    %v144 = vlaneseq
    %v145 = vshrl.u32 %v144, 7
    %v146 = vsub.s32 0, %v145
    %v147 = vrot.slane %v142, %v146
    %v155 = vunpack.c.l.b16 %v62
    %v156 = vunpack.c.l.b16 %v63
    %v157 = vunpack.c.l.b16 %v64
    %v158 = vunpack.c.l.b16 %v65
    %v159 = vunpack.c.l.b16 %v66
    %v160 = vunpack.c.l.b16 %v67
    %v161 = vpack.c.b16 %v156, %v155
    %v162 = vpack.c.b16 %v158, %v157
    %v163 = vpack.c.b16 %v160, %v159
    %167 = vmatprep.subr.bf16.mxu0 0
    %168 = vmatpush1.bf16.msra.mxu0 0
    %169 = vmatprep.subr.bf16.mxu0 0
    %170 = vmatpush1.bf16.msra.mxu0 0
    %171 = vmatprep.subr.bf16.mxu0 0
    %172 = vmatpush1.bf16.msra.mxu0 0
    %173 = vmatprep.subr.bf16.mxu0 0
    %174 = vmatpush1.bf16.msra.mxu0 0
    %175 = vmatprep.subr.bf16.mxu0 0
    %176 = vmatpush1.bf16.msra.mxu0 0
    %177 = vmatprep.subr.bf16.mxu0 0
    %178 = vmatpush1.bf16.msra.mxu0 %v163
    %179 = vmatprep.subr.bf16.mxu0 0
    %180 = vmatpush1.bf16.msra.mxu0 %v162
    %181 = vmatprep.subr.bf16.mxu0 0
    %182 = vmatpush1.bf16.msra.mxu0 %v161
    %183 = vmatprep.subr.bf16.mxu0 0
    %184 = vmatpush2.bf16.msra.mxu0 0
    %185 = vmatprep.subr.bf16.mxu0 0
    %186 = vmatpush2.bf16.msra.mxu0 0
    %187 = vmatprep.subr.bf16.mxu0 0
    %188 = vmatpush2.bf16.msra.mxu0 0
    %189 = vmatprep.subr.bf16.mxu0 0
    %190 = vmatpush2.bf16.msra.mxu0 0
    %191 = vmatprep.subr.bf16.mxu0 0
    %192 = vmatpush2.bf16.msra.mxu0 0
    %193 = vmatprep.subr.bf16.mxu0 0
    %194 = vmatpush2.bf16.msra.mxu0 0
    %195 = vmatprep.subr.bf16.mxu0 0
    %196 = vmatpush2.bf16.msra.mxu0 0
    %197 = vmatprep.subr.bf16.mxu0 0
    %198 = vmatpush2.bf16.msra.mxu0 0
    %199 = vmatprep.mubr.bf16.mxu0 0
    %200 = vmatmul.mubr.bf16.gmra.mxu0 %v99
    %v201 = vpop.f32.mrf.mxu0
    %v202 = vadd.f32 %v147, %v201
    %v203 = vpop.f32.mrf.mxu0
    %v204 = vpop.f32.mrf.mxu0
    %v205 = vadd.f32 %v147, %v204
    %v206 = vpop.f32.mrf.mxu0
    %207 = vdwg.mxu0
    %v208 = vmul.f32 %v202, 1.442695
    %v209 = vpow.pop %v208
    %v210 = vmul.f32 %v205, 1.442695
    %v211 = vpow.pop %v210
    %v212 = vmul.f32 %v136, %v209
    %v213 = vmul.f32 %v139, %v211
    %214 = vst [vmem:[#allocation8] sm:$0xff] %v212
    %215 = vst [vmem:[#allocation8 + $0x8] sm:$0xff] %v213
    // Predicated region
    $region30: #{tpu_custom_call.1} parent=1 // pred_check
      _
    $region31: #{tpu_custom_call.1} parent=1 // pred_check_branch
      %217 = sbr.rel (0) target = $region33
    $region32: #{tpu_custom_call.1} parent=1 // pred_region
      %s219 = ssub.s32 256, 256
      %220 = vsyncadd [#allocation4], %s219
      %s221 = sshll.u32 [#allocation8], 4
      %s222 = int_to_ptr.vmem [resolvable:$true] %s221
      %227 = dma.vmem_to_hbm [thread:$0]  %s222, 256, %s4, [#allocation4], 128, 128, 8
    $region33: #{tpu_custom_call.1} parent=1 // pred_fallthru
      _
    // Predicated region
    $region34: #{tpu_custom_call.1} parent=1 // pred_check
      _
    $region35: #{tpu_custom_call.1} parent=1 // pred_check_branch
      %229 = sbr.rel (0) target = $region37
    $region36: #{tpu_custom_call.1} parent=1 // pred_region
      %230 = dma.done [#allocation4], 256
    $region37: #{tpu_custom_call.1} parent=1 // pred_fallthru
      _
    %231 = vsyncpa [#allocation3], 1
    %232 = vsyncpa [#allocation6], 1
    %233 = vsyncpa [#allocation4], 1

</llo_original>
